<compile_context>
chip_gen: v7x
topology: tpu7x:2x2x1
jax: 0.10.0
libtpu: 0.0.40
codegen_flags: <defaults>
</compile_context>

<pallas_src>
import functools

import jax
import jax.numpy as jnp
import numpy as np
from jax.experimental import pallas as pl
from jax.experimental.pallas import tpu as pltpu


def _round_up(x, m):
    return ((x + m - 1) // m) * m


def _cdiv(a, b):
    return (a + b - 1) // b


def _tester_front_kernel(u_ref, f0_ref, embT_ref, bins_ref, ul_ref, fg_ref, *,
                         neg_inv_two_sigma_sq):
    V1 = embT_ref.shape[1]

    u = u_ref[...]                                   # (1, TM) int32, lane-dense
    f0 = f0_ref[...]                                 # (1, TM) f32,   lane-dense

    # ---- embedding lookup: table^T (H, V1) @ one-hot^T (V1, TM) on the MXU ----
    # (V1, 1) column iota (cheap) broadcast against the (1, TM) token row; the
    # one-hot values are exact in bf16, accumulation is f32.
    row_ids = jax.lax.broadcasted_iota(jnp.int32, (V1, 1), 0)      # (V1, 1)
    onehot_t = (row_ids == u).astype(embT_ref.dtype)                # (V1, TM)
    ul = jnp.dot(embT_ref[...], onehot_t,
                 preferred_element_type=jnp.float32)                # (H, TM) f32
    ul_ref[...] = ul.astype(ul_ref.dtype)

    # ---- gaussian pitch-bin blur: f32 VPU + EUP exp (v5e has no bf16 VPU/EUP) ----
    diff = bins_ref[...] - f0                                       # (P, TM)
    fg_ref[...] = jnp.exp((diff * diff) * neg_inv_two_sigma_sq).astype(fg_ref.dtype)


def tester_forward_front(U, emb_table, f0, f0_bins, *, f0_blur_sigma,
                         tm_target=8192, mxu_dtype=jnp.bfloat16,
                         ul_dtype=jnp.bfloat16, fg_dtype=jnp.float32):
    """Front section of Tester.forward.

    Args:
      U:         (B, T) int32 token ids.
      emb_table: (V+1, H) f32 embedding table (padding row = last row).
      f0:        (B, T) f32 raw pitch.
      f0_bins:   (P,) f32 pitch bin centers.

    Returns:
      ul_lane: (H, BT_pad) lane-dense embedded tokens  (dtype ul_dtype)
      fg_lane: (P, BT_pad) lane-dense gaussian pitch    (dtype fg_dtype)
      bt:      number of valid token columns (= B*T); columns >= bt are padding.

    Production consumers (Unit2Mel contracts over H) should take the lane-dense
    slabs directly as the MXU RHS; use `lanes_to_token_major` only for
    compatibility / testing.  UL matches an f32 gather up to bf16 rounding of
    the table; pass mxu_dtype=ul_dtype=jnp.float32 for exact f32 semantics
    (half MXU rate, irrelevant at these sizes)."""
    B, T = U.shape
    V1, H = emb_table.shape
    P = f0_bins.shape[0]
    BT = B * T

    # Token-tile size: lane-aligned, as large as tm_target allows, but capped so
    # the grid has >= 2 steps when possible (v7x megacore: 2 TCs share the
    # "parallel" axis).  NOTE: for tiny BT a plain XLA gather + exp is cheaper
    # than a pallas_call dispatch; this demo always exercises the kernel.
    tm_aligned = _round_up(max(int(tm_target), 128), 128)
    half_cap = _round_up(max(_cdiv(BT, 2), 1), 128)
    TM = min(tm_aligned, half_cap)
    G = _cdiv(BT, TM)
    BT_pad = G * TM
    pad = BT_pad - BT
    pad_id = V1 - 1        # padding_idx row; padded columns are ignored downstream

    u_lanes = jnp.pad(U.reshape(BT).astype(jnp.int32), (0, pad),
                      constant_values=pad_id).reshape(1, BT_pad)
    f0_lanes = jnp.pad(f0.reshape(BT).astype(jnp.float32),
                       (0, pad)).reshape(1, BT_pad)
    embT = emb_table.astype(mxu_dtype).T                   # (H, V1), VMEM-resident
    bins_col = f0_bins.astype(jnp.float32).reshape(P, 1)   # (P, 1),  VMEM-resident

    neg_inv_two_sigma_sq = -1.0 / (2.0 * float(f0_blur_sigma) ** 2)
    kernel = functools.partial(_tester_front_kernel,
                               neg_inv_two_sigma_sq=neg_inv_two_sigma_sq)

    # VMEM budget estimate (per TC), with 2x headroom, clamped to [32, 64] MiB so
    # it is valid on v5e/v6e (128 MiB) and v7x (64 MiB physical).
    mxu_b = np.dtype(mxu_dtype).itemsize
    ul_b = np.dtype(ul_dtype).itemsize
    fg_b = np.dtype(fg_dtype).itemsize
    est = (2 * TM * (4 + 4)                               # double-buffered u + f0 tiles
           + H * V1 * mxu_b + 8 * 128 * 4                 # resident emb^T + bins
           + 2 * TM * (H * ul_b + P * fg_b)               # double-buffered outputs
           + TM * V1 * (4 + mxu_b)                        # one-hot compare/cast temps
           + TM * P * 4 * 2)                              # gaussian temps
    vmem_limit = int(min(64 << 20, max(32 << 20, 2 * est)))

    # TODO(synk): for vocabularies much larger than a few hundred rows, replace
    # the one-hot MXU trick with a scalar-prefetched pl.Element row gather.
    grid_spec = pltpu.PrefetchScalarGridSpec(
        num_scalar_prefetch=0,
        grid=(G,),
        in_specs=[
            pl.BlockSpec((1, TM), lambda i: (0, i)),     # token ids  (lane-dense)
            pl.BlockSpec((1, TM), lambda i: (0, i)),     # raw f0     (lane-dense)
            pl.BlockSpec((H, V1), lambda i: (0, 0)),     # emb^T      (resident)
            pl.BlockSpec((P, 1), lambda i: (0, 0)),      # pitch bins (resident)
        ],
        out_specs=[
            pl.BlockSpec((H, TM), lambda i: (0, i)),     # UL^T  slab
            pl.BlockSpec((P, TM), lambda i: (0, i)),     # f0_gauss^T slab
        ],
    )

    ul_lane, fg_lane = pl.pallas_call(
        kernel,
        grid_spec=grid_spec,
        out_shape=(
            jax.ShapeDtypeStruct((H, BT_pad), ul_dtype),
            jax.ShapeDtypeStruct((P, BT_pad), fg_dtype),
        ),
        compiler_params=pltpu.CompilerParams(
            dimension_semantics=("parallel",),           # shards tiles across TCs on v7x
            vmem_limit_bytes=vmem_limit),
    )(u_lanes, f0_lanes, embT, bins_col)

    return ul_lane, fg_lane, BT


def lanes_to_token_major(x_lane, B, T):
    """(C, BT_pad) lane-dense slab -> (B, T, C).  Test/compat helper only; the
    production consumer should take the lane-dense slab directly."""
    C = x_lane.shape[0]
    return x_lane[:, :B * T].T.reshape(B, T, C)


if __name__ == "__main__":
    # ---- hp (small, deterministic) ----
    vocab_size = 127          # embedding has vocab_size + 1 rows, padding_idx = vocab_size
    hidden_size = 32
    pitch_bins = 32
    f0_min, f0_max = 80.0, 400.0
    f0_var_min = 80.0
    f0_blur_sigma = 10.0

    B, T = 2, 200             # BT = 400 -> TM = 256, G = 2 (exercises the token grid)

    key = jax.random.PRNGKey(0)
    k_emb, k_u, k_f0 = jax.random.split(key, 3)

    # embedding table, padding row zeroed (PyTorch nn.Embedding padding_idx behavior)
    emb_table = jax.random.normal(k_emb, (vocab_size + 1, hidden_size), jnp.float32)
    emb_table = emb_table.at[vocab_size].set(0.0)

    U = jax.random.randint(k_u, (B, T), 0, vocab_size + 1, dtype=jnp.int32)
    f0 = jax.random.uniform(k_f0, (B, T), jnp.float32, f0_min, f0_max)

    bin_size = (f0_max - f0_min) / pitch_bins
    f0_bins = jnp.arange(pitch_bins, dtype=jnp.float32) * bin_size + f0_var_min

    ul_lane, fg_lane, bt = tester_forward_front(U, emb_table, f0, f0_bins,
                                                f0_blur_sigma=f0_blur_sigma)
    jax.block_until_ready((ul_lane, fg_lane))

    # Token-major views for the reference check only.
    UL = lanes_to_token_major(ul_lane.astype(jnp.float32), B, T)   # (B, T, H)
    f0_gauss = lanes_to_token_major(fg_lane, B, T)                 # (B, T, P)

    # ---- reference check in plain JAX ----
    # Embedding is computed with a bf16 table on the MXU (f32 accumulate) and
    # stored in bf16, so the reference gathers from the bf16-rounded table.
    UL_ref = emb_table.astype(jnp.bfloat16).astype(jnp.float32)[U]     # (B, T, H)
    bins_ref = jnp.broadcast_to(f0_bins[None, None, :], (B, T, pitch_bins))
    f0_exp = jnp.broadcast_to(f0[:, :, None], (B, T, pitch_bins))
    fg_ref = jnp.exp(-(bins_ref - f0_exp) ** 2 / (2.0 * f0_blur_sigma ** 2))

    assert np.allclose(np.asarray(UL), np.asarray(UL_ref), atol=1e-5), "UL mismatch"
    assert np.allclose(np.asarray(f0_gauss), np.asarray(fg_ref), atol=1e-4), "f0 mismatch"

    print("KERNEL_OK")
</pallas_src>

<mosaic_0001>
module attributes {stable_mosaic.version = 11 : i64} {
  func.func @_tester_front_kernel(%arg0: i32, %arg1: memref<1x256xi32, #tpu.memory_space<vmem>>, %arg2: memref<1x256xf32, #tpu.memory_space<vmem>>, %arg3: memref<32x128xbf16, #tpu.memory_space<vmem>>, %arg4: memref<32x1xf32, #tpu.memory_space<vmem>>, %arg5: memref<32x256xbf16, #tpu.memory_space<vmem>>, %arg6: memref<32x256xf32, #tpu.memory_space<vmem>>) attributes {dimension_semantics = [#tpu.dimension_semantics<parallel>], iteration_bounds = array<i64: 2>, scalar_prefetch = 0 : i64, scratch_operands = 0 : i64, tpu.core_type = #tpu.core_type<tc>, window_params = [{transform_indices = @transform_0, window_bounds = array<i64: 1, 256>}, {transform_indices = @transform_1, window_bounds = array<i64: 1, 256>}, {pipeline_mode = #tpu.pipeline_mode<synchronous>, transform_indices = @transform_2, window_bounds = array<i64: 32, 128>}, {pipeline_mode = #tpu.pipeline_mode<synchronous>, transform_indices = @transform_3, window_bounds = array<i64: 32, 1>}, {transform_indices = @transform_4, window_bounds = array<i64: 32, 256>}, {transform_indices = @transform_5, window_bounds = array<i64: 32, 256>}]} {
    %c0 = arith.constant 0 : index
    %c0_0 = arith.constant 0 : index
    %0 = vector.load %arg1[%c0, %c0_0] : memref<1x256xi32, #tpu.memory_space<vmem>>, vector<1x256xi32>
    %c0_1 = arith.constant 0 : index
    %c0_2 = arith.constant 0 : index
    %1 = vector.load %arg2[%c0_1, %c0_2] : memref<1x256xf32, #tpu.memory_space<vmem>>, vector<1x256xf32>
    %2 = tpu.iota {dimensions = array<i32: 0>} : vector<128x1xi32>
    %3 = vector.broadcast %2 : vector<128x1xi32> to vector<128x256xi32>
    %4 = vector.broadcast %0 : vector<1x256xi32> to vector<128x256xi32>
    %5 = arith.cmpi eq, %3, %4 : vector<128x256xi32>
    %6 = arith.extui %5 : vector<128x256xi1> to vector<128x256xi32>
    %7 = arith.sitofp %6 : vector<128x256xi32> to vector<128x256xf32>
    %8 = arith.truncf %7 : vector<128x256xf32> to vector<128x256xbf16>
    %c0_3 = arith.constant 0 : index
    %c0_4 = arith.constant 0 : index
    %9 = vector.load %arg3[%c0_3, %c0_4] : memref<32x128xbf16, #tpu.memory_space<vmem>>, vector<32x128xbf16>
    %cst = arith.constant dense<0.000000e+00> : vector<32x256xf32>
    %10 = tpu.matmul %9, %8, %cst {dimension_numbers = #tpu.dot_dimension_numbers<[1], [0], [0], [1], [0, 0, 1, 1], [], []>} : vector<32x128xbf16>, vector<128x256xbf16>, vector<32x256xf32> -> vector<32x256xf32>
    %11 = arith.truncf %10 : vector<32x256xf32> to vector<32x256xbf16>
    %c0_5 = arith.constant 0 : index
    %c0_6 = arith.constant 0 : index
    %12 = vector.load %arg5[%c0_5, %c0_6] : memref<32x256xbf16, #tpu.memory_space<vmem>>, vector<32x256xbf16>
    tpu.vector_store %arg5[%c0_5, %c0_6], %11 {strides = array<i32>} : memref<32x256xbf16, #tpu.memory_space<vmem>>, vector<32x256xbf16>,
    %c0_7 = arith.constant 0 : index
    %c0_8 = arith.constant 0 : index
    %13 = vector.load %arg4[%c0_7, %c0_8] : memref<32x1xf32, #tpu.memory_space<vmem>>, vector<32x1xf32>
    %14 = vector.broadcast %13 : vector<32x1xf32> to vector<32x256xf32>
    %15 = vector.broadcast %1 : vector<1x256xf32> to vector<32x256xf32>
    %16 = arith.subf %14, %15 : vector<32x256xf32>
    %17 = arith.mulf %16, %16 : vector<32x256xf32>
    %cst_9 = arith.constant -5.000000e-03 : f32
    %18 = vector.broadcast %cst_9 : f32 to vector<32x256xf32>
    %19 = arith.mulf %17, %18 : vector<32x256xf32>
    %20 = math.exp %19 : vector<32x256xf32>
    %c0_10 = arith.constant 0 : index
    %c0_11 = arith.constant 0 : index
    %21 = vector.load %arg6[%c0_10, %c0_11] : memref<32x256xf32, #tpu.memory_space<vmem>>, vector<32x256xf32>
    tpu.vector_store %arg6[%c0_10, %c0_11], %20 {strides = array<i32>} : memref<32x256xf32, #tpu.memory_space<vmem>>, vector<32x256xf32>,
    return
  }
  func.func @transform_0(%arg0: i32) -> (i32, i32) {
    %c0_i32 = arith.constant 0 : i32
    %c0_i32_0 = arith.constant 0 : i32
    return %c0_i32, %arg0 : i32, i32
  }
  func.func @transform_1(%arg0: i32) -> (i32, i32) {
    %c0_i32 = arith.constant 0 : i32
    %c0_i32_0 = arith.constant 0 : i32
    return %c0_i32, %arg0 : i32, i32
  }
  func.func @transform_2(%arg0: i32) -> (i32, i32) {
    %c0_i32 = arith.constant 0 : i32
    %c0_i32_0 = arith.constant 0 : i32
    %c0_i32_1 = arith.constant 0 : i32
    return %c0_i32, %c0_i32_0 : i32, i32
  }
  func.func @transform_3(%arg0: i32) -> (i32, i32) {
    %c0_i32 = arith.constant 0 : i32
    %c0_i32_0 = arith.constant 0 : i32
    %c0_i32_1 = arith.constant 0 : i32
    return %c0_i32, %c0_i32_0 : i32, i32
  }
  func.func @transform_4(%arg0: i32) -> (i32, i32) {
    %c0_i32 = arith.constant 0 : i32
    %c0_i32_0 = arith.constant 0 : i32
    return %c0_i32, %arg0 : i32, i32
  }
  func.func @transform_5(%arg0: i32) -> (i32, i32) {
    %c0_i32 = arith.constant 0 : i32
    %c0_i32_0 = arith.constant 0 : i32
    return %c0_i32, %arg0 : i32, i32
  }
}

</mosaic_0001>

<llo_original>
// kernel: tpu_custom_call.1
$region0: #{tpu_custom_call.1}
  #allocation0 [shape = 'u32[]', space=smem, size = 0x4, offset = 0x4, fixed_abs, tag = 'smem constant byte address 0x4 - core index']
  #allocation1 [shape = 'u32[144,128]{1,0:T(1,128)}', space=vmem, size = 0x12000, scoped, tag = 'internal scratch']
  %s0 = inlined_call_operand.vmem [shape: s32[1,512], index: 0, kind: input, shape index: {}]
  %s1 = inlined_call_operand.vmem [shape: f32[1,512], index: 1, kind: input, shape index: {}]
  %s2 = inlined_call_operand.vmem [shape: bf16[32,128], index: 2, kind: input, shape index: {}]
  %s3 = inlined_call_operand.vmem [shape: f32[32,1], index: 3, kind: input, shape index: {}]
  %s4 = inlined_call_operand.hbm [shape: bf16[32,512], index: 4, kind: output, shape index: {0}]
  %s5 = inlined_call_operand.hbm [shape: f32[32,512], index: 5, kind: output, shape index: {1}]
  %6 = xla_tuple %s4, %s5
  %s7 = sld [smem:[#allocation0]]
  $region57: #{tpu_custom_call.1} parent=0
    _
  %s9 = ssub.s32 1, %s7
  %s10 = scalar_select 0, %s9, %s7
  $region1: #{tpu_custom_call.1} parent=0
    #allocation2 [shape = 'u8[32768]{0}', space=vmem, size = 0x8000, scoped, tag = 'output window, operand 0']
    #allocation3 [shape = 's32[2]{0}', space=sflag, size = 0x8, scoped, tag = 'scoped memory for tpu_custom_call.1']
    #allocation4 [shape = 'u8[65536]{0}', space=vmem, size = 0x10000, scoped, tag = 'output window, operand 1']
    #allocation5 [shape = 's32[2]{0}', space=sflag, size = 0x8, scoped, tag = 'scoped memory for tpu_custom_call.1']
    %11 = vsyncpa [#allocation3], 0
    %s12 = scalar_lea.sflag [#allocation3], 1
    %13 = vsyncpa %s12, 0
    %14 = vsyncpa [#allocation5], 0
    %s15 = scalar_lea.sflag [#allocation5], 1
    %16 = vsyncpa %s15, 0
    loop: start=0, step=1, limit=4
    $region2: #{tpu_custom_call.1} parent=1 // loop_pre_header
      _
    $region3: #{tpu_custom_call.1} parent=1 // loop_header
      %s18 = sphi 0, %s22
      %p19 = scmp.ge.s32.totalorder %s18, 4
      %s28 = sphi 0, %s30
      %s31 = sphi 0, %s28
      %s32 = sphi 0, %s31
      %s48 = sphi 0, %s32
      %s54 = sphi 0, %s56
      %s57 = sphi 0, %s54
      %s58 = sphi 0, %s57
      %s74 = sphi 0, %s58
      %s78 = sphi 0, %s78
      %s80 = sphi 0, %s78
      %s81 = sphi 0, %s80
      %s95 = sphi 0, %s81
      %s99 = sphi 0, %s99
      %s101 = sphi 0, %s99
      %s102 = sphi 0, %s101
      %s116 = sphi 0, %s102
      %s122 = sphi 0, %s124
      %s125 = sphi 0, %s122
      %s126 = sphi 0, %s125
      %s142 = sphi 0, %s126
      %s148 = sphi 0, %s150
      %s151 = sphi 0, %s148
      %s152 = sphi 0, %s151
      %s168 = sphi 0, %s152
    $region4: #{tpu_custom_call.1} parent=1 // loop_header_branch
      %21 = sbr.rel (%p19) target = $region8
    $region5: #{tpu_custom_call.1} parent=1 // loop_body
      %s23 = ssub.s32 %s18, 1
      %s24 = ssub.s32 %s18, 2
      %s25 = sadd.s32 %s18, 1
      %s26 = ssub.s32 %s18, %s25
      %p27 = scmp.eq.s32.totalorder %s26, 0
      %s29 = sadd.s32 %s28, 1
      %s30 = scalar_select %p27, %s28, %s29
      %p33 = pneg %p27
      %p34 = scmp.eq.s32.totalorder %s18, 1
      %p35 = por %p33, %p34
      %p36 = scmp.ne.s32.totalorder %s28, %s31
      %p37 = scmp.eq.s32.totalorder %s18, 0
      %p38 = por %p36, %p37
      %p39 = scmp.ne.s32.totalorder %s28, %s31
      %p40 = scmp.eq.s32.totalorder %s23, 1
      %p41 = por %p39, %p40
      %p42 = scmp.ne.s32.totalorder %s31, %s32
      %p43 = scmp.eq.s32.totalorder %s23, 0
      %p44 = por %p42, %p43
      %p45 = scmp.ne.s32.totalorder %s31, %s32
      %p46 = scmp.eq.s32.totalorder %s24, 1
      %p47 = por %p45, %p46
      %p49 = scmp.ne.s32.totalorder %s32, %s48
      %p50 = scmp.eq.s32.totalorder %s24, 0
      %p51 = por %p49, %p50
      %s52 = ssub.s32 %s18, %s25
      %p53 = scmp.eq.s32.totalorder %s52, 0
      %s55 = sadd.s32 %s54, 1
      %s56 = scalar_select %p53, %s54, %s55
      %p59 = pneg %p53
      %p60 = scmp.eq.s32.totalorder %s18, 1
      %p61 = por %p59, %p60
      %p62 = scmp.ne.s32.totalorder %s54, %s57
      %p63 = scmp.eq.s32.totalorder %s18, 0
      %p64 = por %p62, %p63
      %p65 = scmp.ne.s32.totalorder %s54, %s57
      %p66 = scmp.eq.s32.totalorder %s23, 1
      %p67 = por %p65, %p66
      %p68 = scmp.ne.s32.totalorder %s57, %s58
      %p69 = scmp.eq.s32.totalorder %s23, 0
      %p70 = por %p68, %p69
      %p71 = scmp.ne.s32.totalorder %s57, %s58
      %p72 = scmp.eq.s32.totalorder %s24, 1
      %p73 = por %p71, %p72
      %p75 = scmp.ne.s32.totalorder %s58, %s74
      %p76 = scmp.eq.s32.totalorder %s24, 0
      %p77 = por %p75, %p76
      %s79 = sadd.s32 %s78, 1
      %p82 = scmp.eq.s32.totalorder %s18, 1
      %p83 = scmp.ne.s32.totalorder %s78, %s80
      %p84 = scmp.eq.s32.totalorder %s18, 0
      %p85 = por %p83, %p84
      %p86 = scmp.ne.s32.totalorder %s78, %s80
      %p87 = scmp.eq.s32.totalorder %s23, 1
      %p88 = por %p86, %p87
      %p89 = scmp.ne.s32.totalorder %s80, %s81
      %p90 = scmp.eq.s32.totalorder %s23, 0
      %p91 = por %p89, %p90
      %p92 = scmp.ne.s32.totalorder %s80, %s81
      %p93 = scmp.eq.s32.totalorder %s24, 1
      %p94 = por %p92, %p93
      %p96 = scmp.ne.s32.totalorder %s81, %s95
      %p97 = scmp.eq.s32.totalorder %s24, 0
      %p98 = por %p96, %p97
      %s100 = sadd.s32 %s99, 1
      %p103 = scmp.eq.s32.totalorder %s18, 1
      %p104 = scmp.ne.s32.totalorder %s99, %s101
      %p105 = scmp.eq.s32.totalorder %s18, 0
      %p106 = por %p104, %p105
      %p107 = scmp.ne.s32.totalorder %s99, %s101
      %p108 = scmp.eq.s32.totalorder %s23, 1
      %p109 = por %p107, %p108
      %p110 = scmp.ne.s32.totalorder %s101, %s102
      %p111 = scmp.eq.s32.totalorder %s23, 0
      %p112 = por %p110, %p111
      %p113 = scmp.ne.s32.totalorder %s101, %s102
      %p114 = scmp.eq.s32.totalorder %s24, 1
      %p115 = por %p113, %p114
      %p117 = scmp.ne.s32.totalorder %s102, %s116
      %p118 = scmp.eq.s32.totalorder %s24, 0
      %p119 = por %p117, %p118
      %s120 = ssub.s32 %s18, %s25
      %p121 = scmp.eq.s32.totalorder %s120, 0
      %s123 = sadd.s32 %s122, 1
      %s124 = scalar_select %p121, %s122, %s123
      %p127 = pneg %p121
      %p128 = scmp.eq.s32.totalorder %s18, 1
      %p129 = por %p127, %p128
      %p130 = scmp.ne.s32.totalorder %s122, %s125
      %p131 = scmp.eq.s32.totalorder %s18, 0
      %p132 = por %p130, %p131
      %p133 = scmp.ne.s32.totalorder %s122, %s125
      %p134 = scmp.eq.s32.totalorder %s23, 1
      %p135 = por %p133, %p134
      %p136 = scmp.ne.s32.totalorder %s125, %s126
      %p137 = scmp.eq.s32.totalorder %s23, 0
      %p138 = por %p136, %p137
      %p139 = scmp.ne.s32.totalorder %s125, %s126
      %p140 = scmp.eq.s32.totalorder %s24, 1
      %p141 = por %p139, %p140
      %p143 = scmp.ne.s32.totalorder %s126, %s142
      %p144 = scmp.eq.s32.totalorder %s24, 0
      %p145 = por %p143, %p144
      %s146 = ssub.s32 %s18, %s25
      %p147 = scmp.eq.s32.totalorder %s146, 0
      %s149 = sadd.s32 %s148, 1
      %s150 = scalar_select %p147, %s148, %s149
      %p153 = pneg %p147
      %p154 = scmp.eq.s32.totalorder %s18, 1
      %p155 = por %p153, %p154
      %p156 = scmp.ne.s32.totalorder %s148, %s151
      %p157 = scmp.eq.s32.totalorder %s18, 0
      %p158 = por %p156, %p157
      %p159 = scmp.ne.s32.totalorder %s148, %s151
      %p160 = scmp.eq.s32.totalorder %s23, 1
      %p161 = por %p159, %p160
      %p162 = scmp.ne.s32.totalorder %s151, %s152
      %p163 = scmp.eq.s32.totalorder %s23, 0
      %p164 = por %p162, %p163
      %p165 = scmp.ne.s32.totalorder %s151, %s152
      %p166 = scmp.eq.s32.totalorder %s24, 1
      %p167 = por %p165, %p166
      %p169 = scmp.ne.s32.totalorder %s152, %s168
      %p170 = scmp.eq.s32.totalorder %s24, 0
      %p171 = por %p169, %p170
      %p172 = scmp.le.s32.totalorder 1, %s18
      %p173 = scmp.lt.s32.totalorder %s18, 3
      %p174 = pnand %p172, %p173
      %p175 = pneg %p174
      // Predicated region
      $region9: #{tpu_custom_call.1} parent=5 // pred_check
        _
      $region10: #{tpu_custom_call.1} parent=5 // pred_check_branch
        %177 = sbr.rel (%p174) target = $region12
      $region11: #{tpu_custom_call.1} parent=5 // pred_region
        %s178 = ssub.s32 %s18, 1
        // Predicated region
        $region13: #{tpu_custom_call.1} parent=11 // pred_check
          %p179 = pneg %p91
        $region14: #{tpu_custom_call.1} parent=11 // pred_check_branch
          %181 = sbr.rel (%p179) target = $region16
        $region15: #{tpu_custom_call.1} parent=11 // pred_region
          _
        $region16: #{tpu_custom_call.1} parent=11 // pred_fallthru
          _
        // Predicated region
        $region17: #{tpu_custom_call.1} parent=11 // pred_check
          %p182 = pneg %p112
        $region18: #{tpu_custom_call.1} parent=11 // pred_check_branch
          %184 = sbr.rel (%p182) target = $region20
        $region19: #{tpu_custom_call.1} parent=11 // pred_region
          _
        $region20: #{tpu_custom_call.1} parent=11 // pred_fallthru
          _
      $region12: #{tpu_custom_call.1} parent=5 // pred_fallthru
        _
      %p185 = scmp.lt.s32.totalorder %s18, 2
      // Predicated region
      $region21: #{tpu_custom_call.1} parent=5 // pred_check
        %p186 = pneg %p185
      $region22: #{tpu_custom_call.1} parent=5 // pred_check_branch
        %188 = sbr.rel (%p186) target = $region24
      $region23: #{tpu_custom_call.1} parent=5 // pred_region
        // Predicated region
        $region25: #{tpu_custom_call.1} parent=23 // pred_check
          %p189 = pneg %p38
        $region26: #{tpu_custom_call.1} parent=23 // pred_check_branch
          %191 = sbr.rel (%p189) target = $region28
        $region27: #{tpu_custom_call.1} parent=23 // pred_region
          %s192 = smul.u32 2, %s18
          %p193 = scmp.lt.s32.totalorder %s192, 3
          %s194 = scalar_select %p193, %s192, 3
          %s195 = scalar_lea.vmem %s0, %s194
          %s196 = smul.u32 2, %s18
        $region28: #{tpu_custom_call.1} parent=23 // pred_fallthru
          _
        // Predicated region
        $region29: #{tpu_custom_call.1} parent=23 // pred_check
          %p197 = pneg %p64
        $region30: #{tpu_custom_call.1} parent=23 // pred_check_branch
          %199 = sbr.rel (%p197) target = $region32
        $region31: #{tpu_custom_call.1} parent=23 // pred_region
          %s200 = smul.u32 2, %s18
          %p201 = scmp.lt.s32.totalorder %s200, 3
          %s202 = scalar_select %p201, %s200, 3
          %s203 = scalar_lea.vmem %s1, %s202
          %s204 = smul.u32 2, %s18
        $region32: #{tpu_custom_call.1} parent=23 // pred_fallthru
          _
      $region24: #{tpu_custom_call.1} parent=5 // pred_fallthru
        _
      %p205 = scmp.le.s32.totalorder 1, %s18
      %p206 = scmp.lt.s32.totalorder %s18, 3
      %p207 = pnand %p205, %p206
      %p208 = pneg %p207
      // Predicated region
      $region33: #{tpu_custom_call.1} parent=5 // pred_check
        _
      $region34: #{tpu_custom_call.1} parent=5 // pred_check_branch
        %210 = sbr.rel (%p207) target = $region36
      $region35: #{tpu_custom_call.1} parent=5 // pred_region
        %s211 = ssub.s32 %s18, 1
        %s212 = smul.u32 2, %s23
        %p213 = scmp.lt.s32.totalorder %s212, 3
        %s214 = scalar_select %p213, %s212, 3
        %s215 = scalar_lea.vmem %s0, %s214
        %p216 = pneg %p44
        %p217 = pneg %p41
        %s218 = smul.u32 2, %s23
        %p219 = scmp.lt.s32.totalorder %s218, 3
        %s220 = scalar_select %p219, %s218, 3
        %s221 = scalar_lea.vmem %s1, %s220
        %p222 = pneg %p70
        %p223 = pneg %p67
        %p224 = pneg %p91
        %p225 = pneg %p88
        %p226 = pneg %p112
        %p227 = pneg %p109
        %p228 = pneg %p138
        %p229 = pneg %p135
        %s230 = sand.u32 %s125, 1
        %s231 = scalar_lea.sflag [#allocation3], %s230
        %s232 = sand.u32 %s125, 1
        %s233 = smul.addr %s232, 32
        %s234 = scalar_lea.vmem [#allocation2], %s233
        %p235 = pneg %p164
        %p236 = pneg %p161
        %s237 = sand.u32 %s151, 1
        %s238 = scalar_lea.sflag [#allocation5], %s237
        %s239 = sand.u32 %s151, 1
        %s240 = smul.addr %s239, 64
        %s241 = scalar_lea.vmem [#allocation4], %s240
        %s242 = smul.u32 2, %s23
        %p243 = scmp.lt.s32.totalorder %s242, 3
        %s244 = scalar_select %p243, %s242, 3
        %s245 = scalar_lea.vmem %s0, %s244
        %s246 = smul.u32 2, %s23
        %s247 = smul.u32 2, %s23
        %p248 = scmp.lt.s32.totalorder %s247, 3
        %s249 = scalar_select %p248, %s247, 3
        %s250 = scalar_lea.vmem %s1, %s249
        %s251 = smul.u32 2, %s23
        %s252 = smul.u32 2, %s23
        %s253 = smul.u32 2, %s23
        %v255 = vld [vmem:[%s245] sm:$0x3]
        %v256 = vld [vmem:[%s250] sm:$0x3]
        %v257 = vlaneseq
        %v258 = vshrl.u32 %v257, 7
        %v259 = vadd.s32 %v258, 8
        %v260 = vadd.s32 %v258, 16
        %v261 = vadd.s32 %v258, 24
        %v262 = vadd.s32 %v258, 32
        %v263 = vadd.s32 %v258, 40
        %v264 = vadd.s32 %v258, 48
        %v265 = vadd.s32 %v258, 56
        %v266 = vadd.s32 %v258, 64
        %v267 = vadd.s32 %v258, 72
        %v268 = vadd.s32 %v258, 80
        %v269 = vadd.s32 %v258, 88
        %v270 = vadd.s32 %v258, 96
        %v271 = vadd.s32 %v258, 104
        %v272 = vadd.s32 %v258, 112
        %v273 = vadd.s32 %v258, 120
        %v274 = vlaneseq
        %v275 = vshrl.u32 %v274, 7
        %v276 = vsub.s32 0, %v275
        %v277 = vrot.slane %v255, %v276
        %v278 = vlaneseq
        %v279 = vshrl.u32 %v278, 7
        %v280 = vsub.s32 1, %v279
        %v281 = vrot.slane %v255, %v280
        %vm282 = vcmp.eq.s32.totalorder %v258, %v277
        %vm283 = vcmp.eq.s32.totalorder %v258, %v281
        %vm284 = vcmp.eq.s32.totalorder %v259, %v277
        %vm285 = vcmp.eq.s32.totalorder %v259, %v281
        %vm286 = vcmp.eq.s32.totalorder %v260, %v277
        %vm287 = vcmp.eq.s32.totalorder %v260, %v281
        %vm288 = vcmp.eq.s32.totalorder %v261, %v277
        %vm289 = vcmp.eq.s32.totalorder %v261, %v281
        %vm290 = vcmp.eq.s32.totalorder %v262, %v277
        %vm291 = vcmp.eq.s32.totalorder %v262, %v281
        %vm292 = vcmp.eq.s32.totalorder %v263, %v277
        %vm293 = vcmp.eq.s32.totalorder %v263, %v281
        %vm294 = vcmp.eq.s32.totalorder %v264, %v277
        %vm295 = vcmp.eq.s32.totalorder %v264, %v281
        %vm296 = vcmp.eq.s32.totalorder %v265, %v277
        %vm297 = vcmp.eq.s32.totalorder %v265, %v281
        %vm298 = vcmp.eq.s32.totalorder %v266, %v277
        %vm299 = vcmp.eq.s32.totalorder %v266, %v281
        %vm300 = vcmp.eq.s32.totalorder %v267, %v277
        %vm301 = vcmp.eq.s32.totalorder %v267, %v281
        %vm302 = vcmp.eq.s32.totalorder %v268, %v277
        %vm303 = vcmp.eq.s32.totalorder %v268, %v281
        %vm304 = vcmp.eq.s32.totalorder %v269, %v277
        %vm305 = vcmp.eq.s32.totalorder %v269, %v281
        %vm306 = vcmp.eq.s32.totalorder %v270, %v277
        %vm307 = vcmp.eq.s32.totalorder %v270, %v281
        %vm308 = vcmp.eq.s32.totalorder %v271, %v277
        %vm309 = vcmp.eq.s32.totalorder %v271, %v281
        %vm310 = vcmp.eq.s32.totalorder %v272, %v277
        %vm311 = vcmp.eq.s32.totalorder %v272, %v281
        %vm312 = vcmp.eq.s32.totalorder %v273, %v277
        %vm313 = vcmp.eq.s32.totalorder %v273, %v281
        %v314 = vsel %vm282, 1, 0
        %v315 = vsel %vm283, 1, 0
        %v316 = vsel %vm284, 1, 0
        %v317 = vsel %vm285, 1, 0
        %v318 = vsel %vm286, 1, 0
        %v319 = vsel %vm287, 1, 0
        %v320 = vsel %vm288, 1, 0
        %v321 = vsel %vm289, 1, 0
        %v322 = vsel %vm290, 1, 0
        %v323 = vsel %vm291, 1, 0
        %v324 = vsel %vm292, 1, 0
        %v325 = vsel %vm293, 1, 0
        %v326 = vsel %vm294, 1, 0
        %v327 = vsel %vm295, 1, 0
        %v328 = vsel %vm296, 1, 0
        %v329 = vsel %vm297, 1, 0
        %v330 = vsel %vm298, 1, 0
        %v331 = vsel %vm299, 1, 0
        %v332 = vsel %vm300, 1, 0
        %v333 = vsel %vm301, 1, 0
        %v334 = vsel %vm302, 1, 0
        %v335 = vsel %vm303, 1, 0
        %v336 = vsel %vm304, 1, 0
        %v337 = vsel %vm305, 1, 0
        %v338 = vsel %vm306, 1, 0
        %v339 = vsel %vm307, 1, 0
        %v340 = vsel %vm308, 1, 0
        %v341 = vsel %vm309, 1, 0
        %v342 = vsel %vm310, 1, 0
        %v343 = vsel %vm311, 1, 0
        %v344 = vsel %vm312, 1, 0
        %v345 = vsel %vm313, 1, 0
        %v346 = vcvt.s32.f32 %v314
        %v347 = vcvt.s32.f32 %v315
        %v348 = vcvt.s32.f32 %v316
        %v349 = vcvt.s32.f32 %v317
        %v350 = vcvt.s32.f32 %v318
        %v351 = vcvt.s32.f32 %v319
        %v352 = vcvt.s32.f32 %v320
        %v353 = vcvt.s32.f32 %v321
        %v354 = vcvt.s32.f32 %v322
        %v355 = vcvt.s32.f32 %v323
        %v356 = vcvt.s32.f32 %v324
        %v357 = vcvt.s32.f32 %v325
        %v358 = vcvt.s32.f32 %v326
        %v359 = vcvt.s32.f32 %v327
        %v360 = vcvt.s32.f32 %v328
        %v361 = vcvt.s32.f32 %v329
        %v362 = vcvt.s32.f32 %v330
        %v363 = vcvt.s32.f32 %v331
        %v364 = vcvt.s32.f32 %v332
        %v365 = vcvt.s32.f32 %v333
        %v366 = vcvt.s32.f32 %v334
        %v367 = vcvt.s32.f32 %v335
        %v368 = vcvt.s32.f32 %v336
        %v369 = vcvt.s32.f32 %v337
        %v370 = vcvt.s32.f32 %v338
        %v371 = vcvt.s32.f32 %v339
        %v372 = vcvt.s32.f32 %v340
        %v373 = vcvt.s32.f32 %v341
        %v374 = vcvt.s32.f32 %v342
        %v375 = vcvt.s32.f32 %v343
        %v376 = vcvt.s32.f32 %v344
        %v377 = vcvt.s32.f32 %v345
        %v378 = vpack.c.bf16 %v348, %v346
        %v379 = vpack.c.bf16 %v349, %v347
        %v380 = vpack.c.bf16 %v352, %v350
        %v381 = vpack.c.bf16 %v353, %v351
        %v382 = vpack.c.bf16 %v356, %v354
        %v383 = vpack.c.bf16 %v357, %v355
        %v384 = vpack.c.bf16 %v360, %v358
        %v385 = vpack.c.bf16 %v361, %v359
        %v386 = vpack.c.bf16 %v364, %v362
        %v387 = vpack.c.bf16 %v365, %v363
        %v388 = vpack.c.bf16 %v368, %v366
        %v389 = vpack.c.bf16 %v369, %v367
        %v390 = vpack.c.bf16 %v372, %v370
        %v391 = vpack.c.bf16 %v373, %v371
        %v392 = vpack.c.bf16 %v376, %v374
        %v393 = vpack.c.bf16 %v377, %v375
        %v394 = vld [vmem:[%s2] sm:$0xf]
        %v395 = vld [vmem:[%s2 + $0x4] sm:$0xf]
        %v396 = vld [vmem:[%s2 + $0x8] sm:$0xf]
        %v397 = vld [vmem:[%s2 + $0xc] sm:$0xf]
        %v402 = vunpack.c.l.b16 %v394
        %v403 = vunpack.c.l.b16 %v395
        %v404 = vunpack.c.l.b16 %v396
        %v405 = vunpack.c.l.b16 %v397
        %v406 = vpack.c.b16 %v403, %v402
        %v407 = vpack.c.b16 %v405, %v404
        %410 = vmatprep.subr.bf16.mxu0 %v379
        %411 = vmatpush1.bf16.msra.mxu0 %v378
        %412 = vmatprep.subr.bf16.mxu0 %v381
        %413 = vmatpush1.bf16.msra.mxu0 %v380
        %414 = vmatprep.subr.bf16.mxu0 %v383
        %415 = vmatpush1.bf16.msra.mxu0 %v382
        %416 = vmatprep.subr.bf16.mxu0 %v385
        %417 = vmatpush1.bf16.msra.mxu0 %v384
        %418 = vmatprep.subr.bf16.mxu0 %v387
        %419 = vmatpush1.bf16.msra.mxu0 %v386
        %420 = vmatprep.subr.bf16.mxu0 %v389
        %421 = vmatpush1.bf16.msra.mxu0 %v388
        %422 = vmatprep.subr.bf16.mxu0 %v391
        %423 = vmatpush1.bf16.msra.mxu0 %v390
        %424 = vmatprep.subr.bf16.mxu0 %v393
        %425 = vmatpush1.bf16.msra.mxu0 %v392
        %426 = vmatprep.subr.bf16.mxu0 0
        %427 = vmatpush1.bf16.msra.mxu0 0
        %428 = vmatprep.subr.bf16.mxu0 0
        %429 = vmatpush1.bf16.msra.mxu0 0
        %430 = vmatprep.subr.bf16.mxu0 0
        %431 = vmatpush1.bf16.msra.mxu0 0
        %432 = vmatprep.subr.bf16.mxu0 0
        %433 = vmatpush1.bf16.msra.mxu0 0
        %434 = vmatprep.subr.bf16.mxu0 0
        %435 = vmatpush1.bf16.msra.mxu0 0
        %436 = vmatprep.subr.bf16.mxu0 0
        %437 = vmatpush1.bf16.msra.mxu0 0
        %438 = vmatprep.subr.bf16.mxu0 0
        %439 = vmatpush1.bf16.msra.mxu0 0
        %440 = vmatprep.subr.bf16.mxu0 0
        %441 = vmatpush1.bf16.msra.mxu0 0
        %442 = vmatprep.mubr.bf16.mxu0 0
        %443 = vmatmul.mubr.bf16.gmra.mrb[0].mxu0 %v406
        %v444 = vpop.f32.mrb[0].mxu0
        %v445 = vadd.f32 0.0, %v444
        %v446 = vpop.f32.mrb[0].mxu0
        %v447 = vadd.f32 0.0, %v446
        %v448 = vpop.f32.mrb[0].mxu0
        %v449 = vadd.f32 0.0, %v448
        %v450 = vpop.f32.mrb[0].mxu0
        %v451 = vadd.f32 0.0, %v450
        %452 = vmatprep.mubr.bf16.mxu0 0
        %453 = vmatmul.mubr.bf16.gmra.mrb[0].mxu0 %v407
        %v454 = vpop.f32.mrb[0].mxu0
        %v455 = vadd.f32 0.0, %v454
        %v456 = vpop.f32.mrb[0].mxu0
        %v457 = vadd.f32 0.0, %v456
        %v458 = vpop.f32.mrb[0].mxu0
        %v459 = vadd.f32 0.0, %v458
        %v460 = vpop.f32.mrb[0].mxu0
        %v461 = vadd.f32 0.0, %v460
        %462 = vdwg.mxu0
        %v463 = vpack.c.bf16 %v449, %v445
        %v464 = vpack.c.bf16 %v451, %v447
        %v465 = vpack.c.bf16 %v459, %v455
        %v466 = vpack.c.bf16 %v461, %v457
        %v471 = vunpack.c.l.b16 %v463
        %v472 = vunpack.c.l.b16 %v464
        %v473 = vunpack.c.h.b16 %v463
        %v474 = vunpack.c.h.b16 %v464
        %v475 = vunpack.c.l.b16 %v465
        %v476 = vunpack.c.l.b16 %v466
        %v477 = vunpack.c.h.b16 %v465
        %v478 = vunpack.c.h.b16 %v466
        %v479 = vpack.c.b16 %v472, %v471
        %v480 = vpack.c.b16 %v474, %v473
        %v481 = vpack.c.b16 %v476, %v475
        %v482 = vpack.c.b16 %v478, %v477
        %487 = vst [vmem:[%s234] sm:$0xff] %v479
        %488 = vst [vmem:[%s234 + $0x8] sm:$0xff] %v480
        %489 = vst [vmem:[%s234 + $0x10] sm:$0xff] %v481
        %490 = vst [vmem:[%s234 + $0x18] sm:$0xff] %v482
        %v491 = vld [vmem:[%s3] sm:$0xff]
        %v492 = vld [vmem:[%s3 + $0x8] sm:$0xff]
        %v493 = vld [vmem:[%s3 + $0x10] sm:$0xff]
        %v494 = vld [vmem:[%s3 + $0x18] sm:$0xff]
        %496 = vset.pattern.permute.xlu0 0
        %497 = vperm.xlu0 %496, %v491
        %v498 = vpop.permute.xlu0 %497
        %501 = vset.pattern.permute.xlu0 0
        %502 = vperm.xlu0 %501, %v492
        %v503 = vpop.permute.xlu0 %502
        %506 = vset.pattern.permute.xlu0 0
        %507 = vperm.xlu0 %506, %v493
        %v508 = vpop.permute.xlu0 %507
        %511 = vset.pattern.permute.xlu0 0
        %512 = vperm.xlu0 %511, %v494
        %v513 = vpop.permute.xlu0 %512
        %v516 = vlaneseq
        %v517 = vshrl.u32 %v516, 7
        %v518 = vsub.s32 0, %v517
        %v519 = vrot.slane %v256, %v518
        %v520 = vlaneseq
        %v521 = vshrl.u32 %v520, 7
        %v522 = vsub.s32 1, %v521
        %v523 = vrot.slane %v256, %v522
        %v526 = vsub.f32 %v498, %v519
        %v527 = vsub.f32 %v498, %v523
        %v528 = vsub.f32 %v503, %v519
        %v529 = vsub.f32 %v503, %v523
        %v530 = vsub.f32 %v508, %v519
        %v531 = vsub.f32 %v508, %v523
        %v532 = vsub.f32 %v513, %v519
        %v533 = vsub.f32 %v513, %v523
        %v534 = vmul.f32 %v526, %v526
        %v535 = vmul.f32 %v527, %v527
        %v536 = vmul.f32 %v528, %v528
        %v537 = vmul.f32 %v529, %v529
        %v538 = vmul.f32 %v530, %v530
        %v539 = vmul.f32 %v531, %v531
        %v540 = vmul.f32 %v532, %v532
        %v541 = vmul.f32 %v533, %v533
        %v542 = vmul.f32 %v534, -0.005
        %v543 = vmul.f32 %v535, -0.005
        %v544 = vmul.f32 %v536, -0.005
        %v545 = vmul.f32 %v537, -0.005
        %v546 = vmul.f32 %v538, -0.005
        %v547 = vmul.f32 %v539, -0.005
        %v548 = vmul.f32 %v540, -0.005
        %v549 = vmul.f32 %v541, -0.005
        %v550 = vmul.f32 %v542, 1.442695
        %v551 = vpow.pop %v550
        %v552 = vmul.f32 %v543, 1.442695
        %v553 = vpow.pop %v552
        %v554 = vmul.f32 %v544, 1.442695
        %v555 = vpow.pop %v554
        %v556 = vmul.f32 %v545, 1.442695
        %v557 = vpow.pop %v556
        %v558 = vmul.f32 %v546, 1.442695
        %v559 = vpow.pop %v558
        %v560 = vmul.f32 %v547, 1.442695
        %v561 = vpow.pop %v560
        %v562 = vmul.f32 %v548, 1.442695
        %v563 = vpow.pop %v562
        %v564 = vmul.f32 %v549, 1.442695
        %v565 = vpow.pop %v564
        %566 = vst [vmem:[%s241] sm:$0xff] %v551
        %567 = vst [vmem:[%s241 + $0x8] sm:$0xff] %v553
        %568 = vst [vmem:[%s241 + $0x10] sm:$0xff] %v555
        %569 = vst [vmem:[%s241 + $0x18] sm:$0xff] %v557
        %570 = vst [vmem:[%s241 + $0x20] sm:$0xff] %v559
        %571 = vst [vmem:[%s241 + $0x28] sm:$0xff] %v561
        %572 = vst [vmem:[%s241 + $0x30] sm:$0xff] %v563
        %573 = vst [vmem:[%s241 + $0x38] sm:$0xff] %v565
        %s574 = sand.u32 %s125, 1
        %s575 = scalar_lea.sflag [#allocation3], %s574
        %s576 = sand.u32 %s125, 1
        %s577 = smul.addr %s576, 32
        %s578 = scalar_lea.vmem [#allocation2], %s577
        %s579 = sand.u32 %s151, 1
        %s580 = scalar_lea.sflag [#allocation5], %s579
        %s581 = sand.u32 %s151, 1
        %s582 = smul.addr %s581, 64
        %s583 = scalar_lea.vmem [#allocation4], %s582
        // Predicated region
        $region37: #{tpu_custom_call.1} parent=35 // pred_check
          %p584 = pneg %p135
        $region38: #{tpu_custom_call.1} parent=35 // pred_check_branch
          %586 = sbr.rel (%p584) target = $region40
        $region39: #{tpu_custom_call.1} parent=35 // pred_region
          %s587 = smul.u32 2, %s23
          %s589 = ssub.s32 512, 512
          %590 = vsyncadd %s575, %s589
          %s591 = smul.addr %s587, 64
          %s592 = scalar_lea.hbm %s4, %s591
          %s593 = sshll.u32 %s578, 4
          %s594 = int_to_ptr.vmem [resolvable:$true] %s593
          %599 = dma.vmem_to_hbm [thread:$0]  %s594, 512, %s592, %s575, 128, 256, 8
        $region40: #{tpu_custom_call.1} parent=35 // pred_fallthru
          _
        // Predicated region
        $region41: #{tpu_custom_call.1} parent=35 // pred_check
          %p600 = pneg %p161
        $region42: #{tpu_custom_call.1} parent=35 // pred_check_branch
          %602 = sbr.rel (%p600) target = $region44
        $region43: #{tpu_custom_call.1} parent=35 // pred_region
          %s603 = smul.u32 2, %s23
          %s605 = ssub.s32 1024, 1024
          %606 = vsyncadd %s580, %s605
          %s607 = smul.addr %s603, 128
          %s608 = scalar_lea.hbm %s5, %s607
          %s609 = sshll.u32 %s583, 4
          %s610 = int_to_ptr.vmem [resolvable:$true] %s609
          %615 = dma.vmem_to_hbm [thread:$0]  %s610, 1024, %s608, %s580, 256, 512, 16
        $region44: #{tpu_custom_call.1} parent=35 // pred_fallthru
          _
      $region36: #{tpu_custom_call.1} parent=5 // pred_fallthru
        _
      %p616 = scmp.le.s32.totalorder 2, %s18
      // Predicated region
      $region45: #{tpu_custom_call.1} parent=5 // pred_check
        %p617 = pneg %p616
      $region46: #{tpu_custom_call.1} parent=5 // pred_check_branch
        %619 = sbr.rel (%p617) target = $region48
      $region47: #{tpu_custom_call.1} parent=5 // pred_region
        %s620 = ssub.s32 %s18, 2
        // Predicated region
        $region49: #{tpu_custom_call.1} parent=47 // pred_check
          %p621 = pneg %p141
        $region50: #{tpu_custom_call.1} parent=47 // pred_check_branch
          %623 = sbr.rel (%p621) target = $region52
        $region51: #{tpu_custom_call.1} parent=47 // pred_region
          %s624 = sand.u32 %s126, 1
          %s625 = scalar_lea.sflag [#allocation3], %s624
          %s626 = sand.u32 %s126, 1
          %s627 = smul.addr %s626, 32
          %s628 = scalar_lea.vmem [#allocation2], %s627
          %629 = dma.done %s625, 512
        $region52: #{tpu_custom_call.1} parent=47 // pred_fallthru
          _
        // Predicated region
        $region53: #{tpu_custom_call.1} parent=47 // pred_check
          %p630 = pneg %p167
        $region54: #{tpu_custom_call.1} parent=47 // pred_check_branch
          %632 = sbr.rel (%p630) target = $region56
        $region55: #{tpu_custom_call.1} parent=47 // pred_region
          %s633 = sand.u32 %s152, 1
          %s634 = scalar_lea.sflag [#allocation5], %s633
          %s635 = sand.u32 %s152, 1
          %s636 = smul.addr %s635, 64
          %s637 = scalar_lea.vmem [#allocation4], %s636
          %638 = dma.done %s634, 1024
        $region56: #{tpu_custom_call.1} parent=47 // pred_fallthru
          _
      $region48: #{tpu_custom_call.1} parent=5 // pred_fallthru
        _
    $region6: #{tpu_custom_call.1} parent=1 // loop_footer
      %s22 = sadd.s32 1, %s18
    $region7: #{tpu_custom_call.1} parent=1 // loop_footer_branch
      %17 = sbr.rel target = $region3
    $region8: #{tpu_custom_call.1} parent=1 // loop_exit
      _
    %639 = vsyncpa [#allocation3], 1
    %s640 = scalar_lea.sflag [#allocation3], 1
    %641 = vsyncpa %s640, 1
    %642 = vsyncpa [#allocation5], 1
    %s643 = scalar_lea.sflag [#allocation5], 1
    %644 = vsyncpa %s643, 1

</llo_original>
